<compile_context>
chip_gen: v5e
topology: v5e:2x2
jax: 0.10.0
libtpu: 0.0.40
codegen_flags: <defaults>
</compile_context>

<pallas_src>
import jax
import jax.numpy as jnp
from jax.experimental import pallas as pl
from jax.experimental.pallas import tpu as pltpu

K_IN = 1000      # densenet121 classifier output features
H1 = 32
H2 = 64
LANE = 128       # lane width / output padding target


def mlp_head_kernel(x_ref, w1_ref, b1_ref, w2_ref, b2_ref, w3_ref, b3_ref, o_ref):
    # Layer 1: Linear(1000->32) + ReLU.  x arrives straight from HBM (no
    # wrapper pad/cast pass); cast to bf16 in-register so the MXU runs
    # bf16 x bf16 with f32 accumulation.
    x = x_ref[...].astype(jnp.bfloat16)
    h1 = jnp.dot(x, w1_ref[...], preferred_element_type=jnp.float32)
    h1 = jnp.maximum(h1 + b1_ref[...], 0.0)
    # Dropout (eval mode) == identity

    # Layer 2: Linear(32->64) + ReLU (tiny; kept in f32).
    h2 = jnp.dot(h1, w2_ref[...], preferred_element_type=jnp.float32)
    h2 = jnp.maximum(h2 + b2_ref[...], 0.0)
    # Dropout (eval mode) == identity

    # Layer 3: Linear(64->num_classes), output padded to lane-dense 128 cols.
    out = jnp.dot(h2, w3_ref[...], preferred_element_type=jnp.float32) + b3_ref[...]
    o_ref[...] = out.astype(o_ref.dtype)   # bf16 writeback: halves output HBM traffic


def mlp_head(x, params, *, tb=1024):
    """x: (B, 1000) float32 (or bfloat16) backbone features.
    Returns (B, num_classes) float32.

    tb: batch tile.  1024 fits every chip's default scoped VMEM with f32 x.
    On v7x with large B consider tb=2048-4096 (+ vmem_limit_bytes and
    pipeline_mode=pl.Buffered(3) on the x spec); keep >=2 tiles so both
    TensorCores get work.
    """
    w1, b1, w2, b2, w3, b3 = params
    B, K = x.shape
    assert K == K_IN
    num_classes = w3.shape[1]
    n_pad = ((num_classes + LANE - 1) // LANE) * LANE

    # Weight-side prep only (tiny, one-time): bf16 w1 to pair with the
    # in-kernel bf16 cast of x; lane-pad the class dim of w3/b3.
    w1_p = w1.astype(jnp.bfloat16)
    w3_p = jnp.pad(w3, ((0, 0), (0, n_pad - num_classes)))
    b3_p = jnp.pad(b3, ((0, 0), (0, n_pad - num_classes)))

    # Batch tiling: TB multiple of 8 sublanes; pad B up to a multiple of TB
    # only if needed (no-op for B already a multiple of TB).
    TB = tb if B >= tb else ((B + 7) // 8) * 8
    B_pad = ((B + TB - 1) // TB) * TB
    x_p = x if B_pad == B else jnp.pad(x, ((0, B_pad - B), (0, 0)))

    const = lambda i: (0, 0)  # weights/biases: same block every step (VMEM-resident)
    out = pl.pallas_call(
        mlp_head_kernel,
        out_shape=jax.ShapeDtypeStruct((B_pad, n_pad), jnp.bfloat16),
        grid=(B_pad // TB,),
        in_specs=[
            pl.BlockSpec((TB, K_IN), lambda i: (i, 0)),    # x: streamed per batch tile
            pl.BlockSpec((K_IN, H1), const),               # w1 (bf16)
            pl.BlockSpec((1, H1), const),                  # b1
            pl.BlockSpec((H1, H2), const),                 # w2
            pl.BlockSpec((1, H2), const),                  # b2
            pl.BlockSpec((H2, n_pad), const),              # w3 (lane-padded)
            pl.BlockSpec((1, n_pad), const),               # b3 (lane-padded)
        ],
        out_specs=pl.BlockSpec((TB, n_pad), lambda i: (i, 0)),
        compiler_params=pltpu.CompilerParams(
            dimension_semantics=("parallel",),
        ),
    )(x_p, w1_p, b1, w2, b2, w3_p, b3_p)
    return out[:B, :num_classes].astype(jnp.float32)


def init_params(key, num_classes):
    """Deterministic init mimicking PyTorch nn.Linear default (U(-1/sqrt(fan_in), +1/sqrt(fan_in)))."""
    def linear(key, fan_in, fan_out):
        kw, kb = jax.random.split(key)
        bound = 1.0 / jnp.sqrt(fan_in)
        w = jax.random.uniform(kw, (fan_in, fan_out), jnp.float32, -bound, bound)
        b = jax.random.uniform(kb, (1, fan_out), jnp.float32, -bound, bound)
        return w, b

    k1, k2, k3 = jax.random.split(key, 3)
    w1, b1 = linear(k1, K_IN, H1)
    w2, b2 = linear(k2, H1, H2)
    w3, b3 = linear(k3, H2, num_classes)
    return (w1, b1, w2, b2, w3, b3)


def reference(x, params):
    """Pure-JAX reference of the head (same bf16 rounding on the layer-1 operands)."""
    w1, b1, w2, b2, w3, b3 = params
    xb = x.astype(jnp.bfloat16).astype(jnp.float32)
    w1b = w1.astype(jnp.bfloat16).astype(jnp.float32)
    h = jnp.maximum(xb @ w1b + b1, 0.0)
    h = jnp.maximum(h @ w2 + b2, 0.0)
    return h @ w3 + b3


if __name__ == "__main__":
    # NOTE: at tiny B this kernel is pure launch/DMA overhead; it pays off for
    # batch sizes in the hundreds+ with the large-tile pipelined structure.
    num_classes = 10
    B = 4

    key = jax.random.PRNGKey(0)
    k_params, k_x = jax.random.split(key)

    params = init_params(k_params, num_classes)
    # densenet121 backbone output features (see TODO at top of file)
    x_features = jax.random.normal(k_x, (B, K_IN), jnp.float32)

    out = mlp_head(x_features, params)
    out = jax.block_until_ready(out)

    ref = reference(x_features, params)
    assert out.shape == (B, num_classes)
    # Tolerance covers MXU bf16xbf16/f32-accum vs reference f32 matmul plus the
    # single bf16 rounding of the kernel output.
    assert jnp.allclose(out, ref, atol=2e-2, rtol=2e-2)

    print("KERNEL_OK")
</pallas_src>

<mosaic_0001>
module attributes {stable_mosaic.version = 11 : i64} {
  func.func @mlp_head_kernel(%arg0: i32, %arg1: memref<8x1000xf32, #tpu.memory_space<vmem>>, %arg2: memref<1000x32xbf16, #tpu.memory_space<vmem>>, %arg3: memref<1x32xf32, #tpu.memory_space<vmem>>, %arg4: memref<32x64xf32, #tpu.memory_space<vmem>>, %arg5: memref<1x64xf32, #tpu.memory_space<vmem>>, %arg6: memref<64x128xf32, #tpu.memory_space<vmem>>, %arg7: memref<1x128xf32, #tpu.memory_space<vmem>>, %arg8: memref<8x128xbf16, #tpu.memory_space<vmem>>) attributes {dimension_semantics = [#tpu.dimension_semantics<parallel>], iteration_bounds = array<i64: 1>, scalar_prefetch = 0 : i64, scratch_operands = 0 : i64, tpu.core_type = #tpu.core_type<tc>, window_params = [{transform_indices = @transform_0, window_bounds = array<i64: 8, 1000>}, {pipeline_mode = #tpu.pipeline_mode<synchronous>, transform_indices = @transform_1, window_bounds = array<i64: 1000, 32>}, {pipeline_mode = #tpu.pipeline_mode<synchronous>, transform_indices = @transform_2, window_bounds = array<i64: 1, 32>}, {pipeline_mode = #tpu.pipeline_mode<synchronous>, transform_indices = @transform_3, window_bounds = array<i64: 32, 64>}, {pipeline_mode = #tpu.pipeline_mode<synchronous>, transform_indices = @transform_4, window_bounds = array<i64: 1, 64>}, {pipeline_mode = #tpu.pipeline_mode<synchronous>, transform_indices = @transform_5, window_bounds = array<i64: 64, 128>}, {pipeline_mode = #tpu.pipeline_mode<synchronous>, transform_indices = @transform_6, window_bounds = array<i64: 1, 128>}, {transform_indices = @transform_7, window_bounds = array<i64: 8, 128>}]} {
    %c0 = arith.constant 0 : index
    %c0_0 = arith.constant 0 : index
    %0 = vector.load %arg1[%c0, %c0_0] : memref<8x1000xf32, #tpu.memory_space<vmem>>, vector<8x1000xf32>
    %1 = arith.truncf %0 : vector<8x1000xf32> to vector<8x1000xbf16>
    %c0_1 = arith.constant 0 : index
    %c0_2 = arith.constant 0 : index
    %2 = vector.load %arg2[%c0_1, %c0_2] : memref<1000x32xbf16, #tpu.memory_space<vmem>>, vector<1000x32xbf16>
    %cst = arith.constant dense<0.000000e+00> : vector<8x32xf32>
    %3 = tpu.matmul %1, %2, %cst {dimension_numbers = #tpu.dot_dimension_numbers<[1], [0], [0], [1], [0, 0, 1, 1], [], []>} : vector<8x1000xbf16>, vector<1000x32xbf16>, vector<8x32xf32> -> vector<8x32xf32>
    %c0_3 = arith.constant 0 : index
    %c0_4 = arith.constant 0 : index
    %4 = vector.load %arg3[%c0_3, %c0_4] : memref<1x32xf32, #tpu.memory_space<vmem>>, vector<1x32xf32>
    %5 = vector.broadcast %4 : vector<1x32xf32> to vector<8x32xf32>
    %6 = arith.addf %3, %5 : vector<8x32xf32>
    %cst_5 = arith.constant 0.000000e+00 : f32
    %7 = vector.broadcast %cst_5 : f32 to vector<8x32xf32>
    %8 = arith.maximumf %6, %7 : vector<8x32xf32>
    %c0_6 = arith.constant 0 : index
    %c0_7 = arith.constant 0 : index
    %9 = vector.load %arg4[%c0_6, %c0_7] : memref<32x64xf32, #tpu.memory_space<vmem>>, vector<32x64xf32>
    %cst_8 = arith.constant dense<0.000000e+00> : vector<8x64xf32>
    %10 = tpu.matmul %8, %9, %cst_8 {dimension_numbers = #tpu.dot_dimension_numbers<[1], [0], [0], [1], [0, 0, 1, 1], [], []>} : vector<8x32xf32>, vector<32x64xf32>, vector<8x64xf32> -> vector<8x64xf32>
    %c0_9 = arith.constant 0 : index
    %c0_10 = arith.constant 0 : index
    %11 = vector.load %arg5[%c0_9, %c0_10] : memref<1x64xf32, #tpu.memory_space<vmem>>, vector<1x64xf32>
    %12 = vector.broadcast %11 : vector<1x64xf32> to vector<8x64xf32>
    %13 = arith.addf %10, %12 : vector<8x64xf32>
    %cst_11 = arith.constant 0.000000e+00 : f32
    %14 = vector.broadcast %cst_11 : f32 to vector<8x64xf32>
    %15 = arith.maximumf %13, %14 : vector<8x64xf32>
    %c0_12 = arith.constant 0 : index
    %c0_13 = arith.constant 0 : index
    %16 = vector.load %arg6[%c0_12, %c0_13] : memref<64x128xf32, #tpu.memory_space<vmem>>, vector<64x128xf32>
    %cst_14 = arith.constant dense<0.000000e+00> : vector<8x128xf32>
    %17 = tpu.matmul %15, %16, %cst_14 {dimension_numbers = #tpu.dot_dimension_numbers<[1], [0], [0], [1], [0, 0, 1, 1], [], []>} : vector<8x64xf32>, vector<64x128xf32>, vector<8x128xf32> -> vector<8x128xf32>
    %c0_15 = arith.constant 0 : index
    %c0_16 = arith.constant 0 : index
    %18 = vector.load %arg7[%c0_15, %c0_16] : memref<1x128xf32, #tpu.memory_space<vmem>>, vector<1x128xf32>
    %19 = vector.broadcast %18 : vector<1x128xf32> to vector<8x128xf32>
    %20 = arith.addf %17, %19 : vector<8x128xf32>
    %21 = arith.truncf %20 : vector<8x128xf32> to vector<8x128xbf16>
    %c0_17 = arith.constant 0 : index
    %c0_18 = arith.constant 0 : index
    %22 = vector.load %arg8[%c0_17, %c0_18] : memref<8x128xbf16, #tpu.memory_space<vmem>>, vector<8x128xbf16>
    tpu.vector_store %arg8[%c0_17, %c0_18], %21 {strides = array<i32>} : memref<8x128xbf16, #tpu.memory_space<vmem>>, vector<8x128xbf16>,
    return
  }
  func.func @transform_0(%arg0: i32) -> (i32, i32) {
    %c0_i32 = arith.constant 0 : i32
    %c0_i32_0 = arith.constant 0 : i32
    return %arg0, %c0_i32 : i32, i32
  }
  func.func @transform_1(%arg0: i32) -> (i32, i32) {
    %c0_i32 = arith.constant 0 : i32
    %c0_i32_0 = arith.constant 0 : i32
    %c0_i32_1 = arith.constant 0 : i32
    return %c0_i32, %c0_i32_0 : i32, i32
  }
  func.func @transform_2(%arg0: i32) -> (i32, i32) {
    %c0_i32 = arith.constant 0 : i32
    %c0_i32_0 = arith.constant 0 : i32
    %c0_i32_1 = arith.constant 0 : i32
    return %c0_i32, %c0_i32_0 : i32, i32
  }
  func.func @transform_3(%arg0: i32) -> (i32, i32) {
    %c0_i32 = arith.constant 0 : i32
    %c0_i32_0 = arith.constant 0 : i32
    %c0_i32_1 = arith.constant 0 : i32
    return %c0_i32, %c0_i32_0 : i32, i32
  }
  func.func @transform_4(%arg0: i32) -> (i32, i32) {
    %c0_i32 = arith.constant 0 : i32
    %c0_i32_0 = arith.constant 0 : i32
    %c0_i32_1 = arith.constant 0 : i32
    return %c0_i32, %c0_i32_0 : i32, i32
  }
  func.func @transform_5(%arg0: i32) -> (i32, i32) {
    %c0_i32 = arith.constant 0 : i32
    %c0_i32_0 = arith.constant 0 : i32
    %c0_i32_1 = arith.constant 0 : i32
    return %c0_i32, %c0_i32_0 : i32, i32
  }
  func.func @transform_6(%arg0: i32) -> (i32, i32) {
    %c0_i32 = arith.constant 0 : i32
    %c0_i32_0 = arith.constant 0 : i32
    %c0_i32_1 = arith.constant 0 : i32
    return %c0_i32, %c0_i32_0 : i32, i32
  }
  func.func @transform_7(%arg0: i32) -> (i32, i32) {
    %c0_i32 = arith.constant 0 : i32
    %c0_i32_0 = arith.constant 0 : i32
    return %arg0, %c0_i32 : i32, i32
  }
}

</mosaic_0001>

<llo_original>
// kernel: tpu_custom_call.1
$region0: #{tpu_custom_call.1}
  #allocation0 [shape = 'u32[]', space=smem, size = 0x4, offset = 0x4, fixed_abs, tag = 'smem constant byte address 0x4 - core index']
  #allocation1 [shape = 'u32[72,128]{1,0:T(1,128)}', space=vmem, size = 0x9000, scoped, tag = 'internal scratch']
  %s0 = inlined_call_operand.vmem [shape: f32[8,1000], index: 0, kind: input, shape index: {}]
  %s1 = inlined_call_operand.vmem [shape: bf16[1000,32], index: 1, kind: input, shape index: {}]
  %s2 = inlined_call_operand.vmem [shape: f32[1,32], index: 2, kind: input, shape index: {}]
  %s3 = inlined_call_operand.vmem [shape: f32[32,64], index: 3, kind: input, shape index: {}]
  %s4 = inlined_call_operand.vmem [shape: f32[1,64], index: 4, kind: input, shape index: {}]
  %s5 = inlined_call_operand.vmem [shape: f32[64,128], index: 5, kind: input, shape index: {}]
  %s6 = inlined_call_operand.vmem [shape: f32[1,128], index: 6, kind: input, shape index: {}]
  %s7 = inlined_call_operand.hbm [shape: bf16[8,128], index: 7, kind: output, shape index: {}]
  %s8 = sld [smem:[#allocation0]]
  $region38: #{tpu_custom_call.1} parent=0
    _
  %s10 = ssub.s32 1, %s8
  %s11 = scalar_select 0, %s10, %s8
  $region1: #{tpu_custom_call.1} parent=0
    #allocation2 [shape = 'u8[2048]{0}', space=vmem, size = 0x800, scoped, tag = 'output window, operand 0, single buffered']
    #allocation3 [shape = 's32[1]{0}', space=sflag, size = 0x4, scoped, tag = 'scoped memory for tpu_custom_call.1']
    %12 = vsyncpa [#allocation3], 0
    // Predicated region
    $region2: #{tpu_custom_call.1} parent=1 // pred_check
      _
    $region3: #{tpu_custom_call.1} parent=1 // pred_check_branch
      %14 = sbr.rel (0) target = $region5
    $region4: #{tpu_custom_call.1} parent=1 // pred_region
      _
    $region5: #{tpu_custom_call.1} parent=1 // pred_fallthru
      _
    // Predicated region
    $region6: #{tpu_custom_call.1} parent=1 // pred_check
      _
    $region7: #{tpu_custom_call.1} parent=1 // pred_check_branch
      %16 = sbr.rel (0) target = $region9
    $region8: #{tpu_custom_call.1} parent=1 // pred_region
      _
    $region9: #{tpu_custom_call.1} parent=1 // pred_fallthru
      _
    // Predicated region
    $region10: #{tpu_custom_call.1} parent=1 // pred_check
      _
    $region11: #{tpu_custom_call.1} parent=1 // pred_check_branch
      %18 = sbr.rel (0) target = $region13
    $region12: #{tpu_custom_call.1} parent=1 // pred_region
      _
    $region13: #{tpu_custom_call.1} parent=1 // pred_fallthru
      _
    // Predicated region
    $region14: #{tpu_custom_call.1} parent=1 // pred_check
      _
    $region15: #{tpu_custom_call.1} parent=1 // pred_check_branch
      %20 = sbr.rel (0) target = $region17
    $region16: #{tpu_custom_call.1} parent=1 // pred_region
      _
    $region17: #{tpu_custom_call.1} parent=1 // pred_fallthru
      _
    // Predicated region
    $region18: #{tpu_custom_call.1} parent=1 // pred_check
      _
    $region19: #{tpu_custom_call.1} parent=1 // pred_check_branch
      %22 = sbr.rel (0) target = $region21
    $region20: #{tpu_custom_call.1} parent=1 // pred_region
      _
    $region21: #{tpu_custom_call.1} parent=1 // pred_fallthru
      _
    // Predicated region
    $region22: #{tpu_custom_call.1} parent=1 // pred_check
      _
    $region23: #{tpu_custom_call.1} parent=1 // pred_check_branch
      %24 = sbr.rel (0) target = $region25
    $region24: #{tpu_custom_call.1} parent=1 // pred_region
      _
    $region25: #{tpu_custom_call.1} parent=1 // pred_fallthru
      _
    // Predicated region
    $region26: #{tpu_custom_call.1} parent=1 // pred_check
      _
    $region27: #{tpu_custom_call.1} parent=1 // pred_check_branch
      %26 = sbr.rel (0) target = $region29
    $region28: #{tpu_custom_call.1} parent=1 // pred_region
      _
    $region29: #{tpu_custom_call.1} parent=1 // pred_fallthru
      _
    %v28 = vld [vmem:[%s0] sm:$0xff]
    %v29 = vld [vmem:[%s0 + $0x8] sm:$0xff]
    %v30 = vld [vmem:[%s0 + $0x10] sm:$0xff]
    %v31 = vld [vmem:[%s0 + $0x18] sm:$0xff]
    %v32 = vld [vmem:[%s0 + $0x20] sm:$0xff]
    %v33 = vld [vmem:[%s0 + $0x28] sm:$0xff]
    %v34 = vld [vmem:[%s0 + $0x30] sm:$0xff]
    %v35 = vld [vmem:[%s0 + $0x38] sm:$0xff]
    %v36 = vpack.c.bf16 %v28, %v28
    %v37 = vpack.c.bf16 %v29, %v29
    %v38 = vpack.c.bf16 %v30, %v30
    %v39 = vpack.c.bf16 %v31, %v31
    %v40 = vpack.c.bf16 %v32, %v32
    %v41 = vpack.c.bf16 %v33, %v33
    %v42 = vpack.c.bf16 %v34, %v34
    %v43 = vpack.c.bf16 %v35, %v35
    %v44 = vld [vmem:[%s1] sm:$0xf]
    %v45 = vld [vmem:[%s1 + $0x4] sm:$0xf]
    %v46 = vld [vmem:[%s1 + $0x8] sm:$0xf]
    %v47 = vld [vmem:[%s1 + $0xc] sm:$0xf]
    %v48 = vld [vmem:[%s1 + $0x10] sm:$0xf]
    %v49 = vld [vmem:[%s1 + $0x14] sm:$0xf]
    %v50 = vld [vmem:[%s1 + $0x18] sm:$0xf]
    %v51 = vld [vmem:[%s1 + $0x1c] sm:$0xf]
    %v52 = vld [vmem:[%s1 + $0x20] sm:$0xf]
    %v53 = vld [vmem:[%s1 + $0x24] sm:$0xf]
    %v54 = vld [vmem:[%s1 + $0x28] sm:$0xf]
    %v55 = vld [vmem:[%s1 + $0x2c] sm:$0xf]
    %v56 = vld [vmem:[%s1 + $0x30] sm:$0xf]
    %v57 = vld [vmem:[%s1 + $0x34] sm:$0xf]
    %v58 = vld [vmem:[%s1 + $0x38] sm:$0xf]
    %v59 = vld [vmem:[%s1 + $0x3c] sm:$0xf]
    %v60 = vld [vmem:[%s1 + $0x40] sm:$0xf]
    %v61 = vld [vmem:[%s1 + $0x44] sm:$0xf]
    %v62 = vld [vmem:[%s1 + $0x48] sm:$0xf]
    %v63 = vld [vmem:[%s1 + $0x4c] sm:$0xf]
    %v64 = vld [vmem:[%s1 + $0x50] sm:$0xf]
    %v65 = vld [vmem:[%s1 + $0x54] sm:$0xf]
    %v66 = vld [vmem:[%s1 + $0x58] sm:$0xf]
    %v67 = vld [vmem:[%s1 + $0x5c] sm:$0xf]
    %v68 = vld [vmem:[%s1 + $0x60] sm:$0xf]
    %v69 = vld [vmem:[%s1 + $0x64] sm:$0xf]
    %v70 = vld [vmem:[%s1 + $0x68] sm:$0xf]
    %v71 = vld [vmem:[%s1 + $0x6c] sm:$0xf]
    %v72 = vld [vmem:[%s1 + $0x70] sm:$0xf]
    %v73 = vld [vmem:[%s1 + $0x74] sm:$0xf]
    %v74 = vld [vmem:[%s1 + $0x78] sm:$0xf]
    %v75 = vld [vmem:[%s1 + $0x7c] sm:$0xf]
    %v76 = vld [vmem:[%s1 + $0x80] sm:$0xf]
    %v77 = vld [vmem:[%s1 + $0x84] sm:$0xf]
    %v78 = vld [vmem:[%s1 + $0x88] sm:$0xf]
    %v79 = vld [vmem:[%s1 + $0x8c] sm:$0xf]
    %v80 = vld [vmem:[%s1 + $0x90] sm:$0xf]
    %v81 = vld [vmem:[%s1 + $0x94] sm:$0xf]
    %v82 = vld [vmem:[%s1 + $0x98] sm:$0xf]
    %v83 = vld [vmem:[%s1 + $0x9c] sm:$0xf]
    %v84 = vld [vmem:[%s1 + $0xa0] sm:$0xf]
    %v85 = vld [vmem:[%s1 + $0xa4] sm:$0xf]
    %v86 = vld [vmem:[%s1 + $0xa8] sm:$0xf]
    %v87 = vld [vmem:[%s1 + $0xac] sm:$0xf]
    %v88 = vld [vmem:[%s1 + $0xb0] sm:$0xf]
    %v89 = vld [vmem:[%s1 + $0xb4] sm:$0xf]
    %v90 = vld [vmem:[%s1 + $0xb8] sm:$0xf]
    %v91 = vld [vmem:[%s1 + $0xbc] sm:$0xf]
    %v92 = vld [vmem:[%s1 + $0xc0] sm:$0xf]
    %v93 = vld [vmem:[%s1 + $0xc4] sm:$0xf]
    %v94 = vld [vmem:[%s1 + $0xc8] sm:$0xf]
    %v95 = vld [vmem:[%s1 + $0xcc] sm:$0xf]
    %v96 = vld [vmem:[%s1 + $0xd0] sm:$0xf]
    %v97 = vld [vmem:[%s1 + $0xd4] sm:$0xf]
    %v98 = vld [vmem:[%s1 + $0xd8] sm:$0xf]
    %v99 = vld [vmem:[%s1 + $0xdc] sm:$0xf]
    %v100 = vld [vmem:[%s1 + $0xe0] sm:$0xf]
    %v101 = vld [vmem:[%s1 + $0xe4] sm:$0xf]
    %v102 = vld [vmem:[%s1 + $0xe8] sm:$0xf]
    %v103 = vld [vmem:[%s1 + $0xec] sm:$0xf]
    %v104 = vld [vmem:[%s1 + $0xf0] sm:$0xf]
    %v105 = vld [vmem:[%s1 + $0xf4] sm:$0xf]
    %v106 = vld [vmem:[%s1 + $0xf8] sm:$0xf]
    %v107 = vld [vmem:[%s1 + $0xfc] sm:$0xf]
    %v108 = vld [vmem:[%s1 + $0x100] sm:$0xf]
    %v109 = vld [vmem:[%s1 + $0x104] sm:$0xf]
    %v110 = vld [vmem:[%s1 + $0x108] sm:$0xf]
    %v111 = vld [vmem:[%s1 + $0x10c] sm:$0xf]
    %v112 = vld [vmem:[%s1 + $0x110] sm:$0xf]
    %v113 = vld [vmem:[%s1 + $0x114] sm:$0xf]
    %v114 = vld [vmem:[%s1 + $0x118] sm:$0xf]
    %v115 = vld [vmem:[%s1 + $0x11c] sm:$0xf]
    %v116 = vld [vmem:[%s1 + $0x120] sm:$0xf]
    %v117 = vld [vmem:[%s1 + $0x124] sm:$0xf]
    %v118 = vld [vmem:[%s1 + $0x128] sm:$0xf]
    %v119 = vld [vmem:[%s1 + $0x12c] sm:$0xf]
    %v120 = vld [vmem:[%s1 + $0x130] sm:$0xf]
    %v121 = vld [vmem:[%s1 + $0x134] sm:$0xf]
    %v122 = vld [vmem:[%s1 + $0x138] sm:$0xf]
    %v123 = vld [vmem:[%s1 + $0x13c] sm:$0xf]
    %v124 = vld [vmem:[%s1 + $0x140] sm:$0xf]
    %v125 = vld [vmem:[%s1 + $0x144] sm:$0xf]
    %v126 = vld [vmem:[%s1 + $0x148] sm:$0xf]
    %v127 = vld [vmem:[%s1 + $0x14c] sm:$0xf]
    %v128 = vld [vmem:[%s1 + $0x150] sm:$0xf]
    %v129 = vld [vmem:[%s1 + $0x154] sm:$0xf]
    %v130 = vld [vmem:[%s1 + $0x158] sm:$0xf]
    %v131 = vld [vmem:[%s1 + $0x15c] sm:$0xf]
    %v132 = vld [vmem:[%s1 + $0x160] sm:$0xf]
    %v133 = vld [vmem:[%s1 + $0x164] sm:$0xf]
    %v134 = vld [vmem:[%s1 + $0x168] sm:$0xf]
    %v135 = vld [vmem:[%s1 + $0x16c] sm:$0xf]
    %v136 = vld [vmem:[%s1 + $0x170] sm:$0xf]
    %v137 = vld [vmem:[%s1 + $0x174] sm:$0xf]
    %v138 = vld [vmem:[%s1 + $0x178] sm:$0xf]
    %v139 = vld [vmem:[%s1 + $0x17c] sm:$0xf]
    %v140 = vld [vmem:[%s1 + $0x180] sm:$0xf]
    %v141 = vld [vmem:[%s1 + $0x184] sm:$0xf]
    %v142 = vld [vmem:[%s1 + $0x188] sm:$0xf]
    %v143 = vld [vmem:[%s1 + $0x18c] sm:$0xf]
    %v144 = vld [vmem:[%s1 + $0x190] sm:$0xf]
    %v145 = vld [vmem:[%s1 + $0x194] sm:$0xf]
    %v146 = vld [vmem:[%s1 + $0x198] sm:$0xf]
    %v147 = vld [vmem:[%s1 + $0x19c] sm:$0xf]
    %v148 = vld [vmem:[%s1 + $0x1a0] sm:$0xf]
    %v149 = vld [vmem:[%s1 + $0x1a4] sm:$0xf]
    %v150 = vld [vmem:[%s1 + $0x1a8] sm:$0xf]
    %v151 = vld [vmem:[%s1 + $0x1ac] sm:$0xf]
    %v152 = vld [vmem:[%s1 + $0x1b0] sm:$0xf]
    %v153 = vld [vmem:[%s1 + $0x1b4] sm:$0xf]
    %v154 = vld [vmem:[%s1 + $0x1b8] sm:$0xf]
    %v155 = vld [vmem:[%s1 + $0x1bc] sm:$0xf]
    %v156 = vld [vmem:[%s1 + $0x1c0] sm:$0xf]
    %v157 = vld [vmem:[%s1 + $0x1c4] sm:$0xf]
    %v158 = vld [vmem:[%s1 + $0x1c8] sm:$0xf]
    %v159 = vld [vmem:[%s1 + $0x1cc] sm:$0xf]
    %v160 = vld [vmem:[%s1 + $0x1d0] sm:$0xf]
    %v161 = vld [vmem:[%s1 + $0x1d4] sm:$0xf]
    %v162 = vld [vmem:[%s1 + $0x1d8] sm:$0xf]
    %v163 = vld [vmem:[%s1 + $0x1dc] sm:$0xf]
    %v164 = vld [vmem:[%s1 + $0x1e0] sm:$0xf]
    %v165 = vld [vmem:[%s1 + $0x1e4] sm:$0xf]
    %v166 = vld [vmem:[%s1 + $0x1e8] sm:$0xf]
    %v167 = vld [vmem:[%s1 + $0x1ec] sm:$0xf]
    %v168 = vld [vmem:[%s1 + $0x1f0] sm:$0xf]
    %v169 = vld [vmem:[%s2] sm:$0x1]
    %v171 = vperm.slane %v169, 0
    %v298 = vunpack.c.l.b16 %v44
    %v299 = vunpack.c.l.b16 %v45
    %v300 = vunpack.c.l.b16 %v46
    %v301 = vunpack.c.l.b16 %v47
    %v302 = vunpack.c.l.b16 %v48
    %v303 = vunpack.c.l.b16 %v49
    %v304 = vunpack.c.l.b16 %v50
    %v305 = vunpack.c.l.b16 %v51
    %v306 = vunpack.c.l.b16 %v52
    %v307 = vunpack.c.l.b16 %v53
    %v308 = vunpack.c.l.b16 %v54
    %v309 = vunpack.c.l.b16 %v55
    %v310 = vunpack.c.l.b16 %v56
    %v311 = vunpack.c.l.b16 %v57
    %v312 = vunpack.c.l.b16 %v58
    %v313 = vunpack.c.l.b16 %v59
    %v314 = vunpack.c.l.b16 %v60
    %v315 = vunpack.c.l.b16 %v61
    %v316 = vunpack.c.l.b16 %v62
    %v317 = vunpack.c.l.b16 %v63
    %v318 = vunpack.c.l.b16 %v64
    %v319 = vunpack.c.l.b16 %v65
    %v320 = vunpack.c.l.b16 %v66
    %v321 = vunpack.c.l.b16 %v67
    %v322 = vunpack.c.l.b16 %v68
    %v323 = vunpack.c.l.b16 %v69
    %v324 = vunpack.c.l.b16 %v70
    %v325 = vunpack.c.l.b16 %v71
    %v326 = vunpack.c.l.b16 %v72
    %v327 = vunpack.c.l.b16 %v73
    %v328 = vunpack.c.l.b16 %v74
    %v329 = vunpack.c.l.b16 %v75
    %v330 = vunpack.c.l.b16 %v76
    %v331 = vunpack.c.l.b16 %v77
    %v332 = vunpack.c.l.b16 %v78
    %v333 = vunpack.c.l.b16 %v79
    %v334 = vunpack.c.l.b16 %v80
    %v335 = vunpack.c.l.b16 %v81
    %v336 = vunpack.c.l.b16 %v82
    %v337 = vunpack.c.l.b16 %v83
    %v338 = vunpack.c.l.b16 %v84
    %v339 = vunpack.c.l.b16 %v85
    %v340 = vunpack.c.l.b16 %v86
    %v341 = vunpack.c.l.b16 %v87
    %v342 = vunpack.c.l.b16 %v88
    %v343 = vunpack.c.l.b16 %v89
    %v344 = vunpack.c.l.b16 %v90
    %v345 = vunpack.c.l.b16 %v91
    %v346 = vunpack.c.l.b16 %v92
    %v347 = vunpack.c.l.b16 %v93
    %v348 = vunpack.c.l.b16 %v94
    %v349 = vunpack.c.l.b16 %v95
    %v350 = vunpack.c.l.b16 %v96
    %v351 = vunpack.c.l.b16 %v97
    %v352 = vunpack.c.l.b16 %v98
    %v353 = vunpack.c.l.b16 %v99
    %v354 = vunpack.c.l.b16 %v100
    %v355 = vunpack.c.l.b16 %v101
    %v356 = vunpack.c.l.b16 %v102
    %v357 = vunpack.c.l.b16 %v103
    %v358 = vunpack.c.l.b16 %v104
    %v359 = vunpack.c.l.b16 %v105
    %v360 = vunpack.c.l.b16 %v106
    %v361 = vunpack.c.l.b16 %v107
    %v362 = vunpack.c.l.b16 %v108
    %v363 = vunpack.c.l.b16 %v109
    %v364 = vunpack.c.l.b16 %v110
    %v365 = vunpack.c.l.b16 %v111
    %v366 = vunpack.c.l.b16 %v112
    %v367 = vunpack.c.l.b16 %v113
    %v368 = vunpack.c.l.b16 %v114
    %v369 = vunpack.c.l.b16 %v115
    %v370 = vunpack.c.l.b16 %v116
    %v371 = vunpack.c.l.b16 %v117
    %v372 = vunpack.c.l.b16 %v118
    %v373 = vunpack.c.l.b16 %v119
    %v374 = vunpack.c.l.b16 %v120
    %v375 = vunpack.c.l.b16 %v121
    %v376 = vunpack.c.l.b16 %v122
    %v377 = vunpack.c.l.b16 %v123
    %v378 = vunpack.c.l.b16 %v124
    %v379 = vunpack.c.l.b16 %v125
    %v380 = vunpack.c.l.b16 %v126
    %v381 = vunpack.c.l.b16 %v127
    %v382 = vunpack.c.l.b16 %v128
    %v383 = vunpack.c.l.b16 %v129
    %v384 = vunpack.c.l.b16 %v130
    %v385 = vunpack.c.l.b16 %v131
    %v386 = vunpack.c.l.b16 %v132
    %v387 = vunpack.c.l.b16 %v133
    %v388 = vunpack.c.l.b16 %v134
    %v389 = vunpack.c.l.b16 %v135
    %v390 = vunpack.c.l.b16 %v136
    %v391 = vunpack.c.l.b16 %v137
    %v392 = vunpack.c.l.b16 %v138
    %v393 = vunpack.c.l.b16 %v139
    %v394 = vunpack.c.l.b16 %v140
    %v395 = vunpack.c.l.b16 %v141
    %v396 = vunpack.c.l.b16 %v142
    %v397 = vunpack.c.l.b16 %v143
    %v398 = vunpack.c.l.b16 %v144
    %v399 = vunpack.c.l.b16 %v145
    %v400 = vunpack.c.l.b16 %v146
    %v401 = vunpack.c.l.b16 %v147
    %v402 = vunpack.c.l.b16 %v148
    %v403 = vunpack.c.l.b16 %v149
    %v404 = vunpack.c.l.b16 %v150
    %v405 = vunpack.c.l.b16 %v151
    %v406 = vunpack.c.l.b16 %v152
    %v407 = vunpack.c.l.b16 %v153
    %v408 = vunpack.c.l.b16 %v154
    %v409 = vunpack.c.l.b16 %v155
    %v410 = vunpack.c.l.b16 %v156
    %v411 = vunpack.c.l.b16 %v157
    %v412 = vunpack.c.l.b16 %v158
    %v413 = vunpack.c.l.b16 %v159
    %v414 = vunpack.c.l.b16 %v160
    %v415 = vunpack.c.l.b16 %v161
    %v416 = vunpack.c.l.b16 %v162
    %v417 = vunpack.c.l.b16 %v163
    %v418 = vunpack.c.l.b16 %v164
    %v419 = vunpack.c.l.b16 %v165
    %v420 = vunpack.c.l.b16 %v166
    %v421 = vunpack.c.l.b16 %v167
    %v422 = vunpack.c.l.b16 %v168
    %v423 = vpack.c.b16 %v299, %v298
    %v424 = vpack.c.b16 %v301, %v300
    %v425 = vpack.c.b16 %v303, %v302
    %v426 = vpack.c.b16 %v305, %v304
    %v427 = vpack.c.b16 %v307, %v306
    %v428 = vpack.c.b16 %v309, %v308
    %v429 = vpack.c.b16 %v311, %v310
    %v430 = vpack.c.b16 %v313, %v312
    %v431 = vpack.c.b16 %v315, %v314
    %v432 = vpack.c.b16 %v317, %v316
    %v433 = vpack.c.b16 %v319, %v318
    %v434 = vpack.c.b16 %v321, %v320
    %v435 = vpack.c.b16 %v323, %v322
    %v436 = vpack.c.b16 %v325, %v324
    %v437 = vpack.c.b16 %v327, %v326
    %v438 = vpack.c.b16 %v329, %v328
    %v439 = vpack.c.b16 %v331, %v330
    %v440 = vpack.c.b16 %v333, %v332
    %v441 = vpack.c.b16 %v335, %v334
    %v442 = vpack.c.b16 %v337, %v336
    %v443 = vpack.c.b16 %v339, %v338
    %v444 = vpack.c.b16 %v341, %v340
    %v445 = vpack.c.b16 %v343, %v342
    %v446 = vpack.c.b16 %v345, %v344
    %v447 = vpack.c.b16 %v347, %v346
    %v448 = vpack.c.b16 %v349, %v348
    %v449 = vpack.c.b16 %v351, %v350
    %v450 = vpack.c.b16 %v353, %v352
    %v451 = vpack.c.b16 %v355, %v354
    %v452 = vpack.c.b16 %v357, %v356
    %v453 = vpack.c.b16 %v359, %v358
    %v454 = vpack.c.b16 %v361, %v360
    %v455 = vpack.c.b16 %v363, %v362
    %v456 = vpack.c.b16 %v365, %v364
    %v457 = vpack.c.b16 %v367, %v366
    %v458 = vpack.c.b16 %v369, %v368
    %v459 = vpack.c.b16 %v371, %v370
    %v460 = vpack.c.b16 %v373, %v372
    %v461 = vpack.c.b16 %v375, %v374
    %v462 = vpack.c.b16 %v377, %v376
    %v463 = vpack.c.b16 %v379, %v378
    %v464 = vpack.c.b16 %v381, %v380
    %v465 = vpack.c.b16 %v383, %v382
    %v466 = vpack.c.b16 %v385, %v384
    %v467 = vpack.c.b16 %v387, %v386
    %v468 = vpack.c.b16 %v389, %v388
    %v469 = vpack.c.b16 %v391, %v390
    %v470 = vpack.c.b16 %v393, %v392
    %v471 = vpack.c.b16 %v395, %v394
    %v472 = vpack.c.b16 %v397, %v396
    %v473 = vpack.c.b16 %v399, %v398
    %v474 = vpack.c.b16 %v401, %v400
    %v475 = vpack.c.b16 %v403, %v402
    %v476 = vpack.c.b16 %v405, %v404
    %v477 = vpack.c.b16 %v407, %v406
    %v478 = vpack.c.b16 %v409, %v408
    %v479 = vpack.c.b16 %v411, %v410
    %v480 = vpack.c.b16 %v413, %v412
    %v481 = vpack.c.b16 %v415, %v414
    %v482 = vpack.c.b16 %v417, %v416
    %v483 = vpack.c.b16 %v419, %v418
    %v484 = vpack.c.b16 %v421, %v420
    %v485 = vpack.c.b16 %v422, %v422
    %vm548 = vcmask 850944
    %v550 = vsel %vm548, %v43, 0
    %vm552 = vcmask 1043456
    %v554 = vsel %vm552, %v485, 0
    %556 = vmatpush.bf16.msra.mxu0 %v430
    %557 = vmatpush.bf16.msra.mxu0 %v429
    %558 = vmatpush.bf16.msra.mxu0 %v428
    %559 = vmatpush.bf16.msra.mxu0 %v427
    %560 = vmatpush.bf16.msra.mxu0 %v426
    %561 = vmatpush.bf16.msra.mxu0 %v425
    %562 = vmatpush.bf16.msra.mxu0 %v424
    %563 = vmatpush.bf16.msra.mxu0 %v423
    %564 = vmatmul.bf16.gmra.mxu0 %v36
    %v565 = vpop.f32.mrf.mxu0
    %v566 = vadd.f32 %v171, %v565
    %v567 = vpop.f32.mrf.mxu0
    %568 = vdwg.mxu0
    %569 = vmatpush.bf16.msra.mxu0 %v438
    %570 = vmatpush.bf16.msra.mxu0 %v437
    %571 = vmatpush.bf16.msra.mxu0 %v436
    %572 = vmatpush.bf16.msra.mxu0 %v435
    %573 = vmatpush.bf16.msra.mxu0 %v434
    %574 = vmatpush.bf16.msra.mxu0 %v433
    %575 = vmatpush.bf16.msra.mxu0 %v432
    %576 = vmatpush.bf16.msra.mxu0 %v431
    %577 = vmatmul.bf16.gmra.mxu0 %v37
    %v578 = vpop.f32.mrf.mxu0
    %v579 = vadd.f32 %v566, %v578
    %v580 = vpop.f32.mrf.mxu0
    %581 = vdwg.mxu0
    %582 = vmatpush.bf16.msra.mxu0 %v446
    %583 = vmatpush.bf16.msra.mxu0 %v445
    %584 = vmatpush.bf16.msra.mxu0 %v444
    %585 = vmatpush.bf16.msra.mxu0 %v443
    %586 = vmatpush.bf16.msra.mxu0 %v442
    %587 = vmatpush.bf16.msra.mxu0 %v441
    %588 = vmatpush.bf16.msra.mxu0 %v440
    %589 = vmatpush.bf16.msra.mxu0 %v439
    %590 = vmatmul.bf16.gmra.mxu0 %v38
    %v591 = vpop.f32.mrf.mxu0
    %v592 = vadd.f32 %v579, %v591
    %v593 = vpop.f32.mrf.mxu0
    %594 = vdwg.mxu0
    %595 = vmatpush.bf16.msra.mxu0 %v454
    %596 = vmatpush.bf16.msra.mxu0 %v453
    %597 = vmatpush.bf16.msra.mxu0 %v452
    %598 = vmatpush.bf16.msra.mxu0 %v451
    %599 = vmatpush.bf16.msra.mxu0 %v450
    %600 = vmatpush.bf16.msra.mxu0 %v449
    %601 = vmatpush.bf16.msra.mxu0 %v448
    %602 = vmatpush.bf16.msra.mxu0 %v447
    %603 = vmatmul.bf16.gmra.mxu0 %v39
    %v604 = vpop.f32.mrf.mxu0
    %v605 = vadd.f32 %v592, %v604
    %v606 = vpop.f32.mrf.mxu0
    %607 = vdwg.mxu0
    %608 = vmatpush.bf16.msra.mxu0 %v462
    %609 = vmatpush.bf16.msra.mxu0 %v461
    %610 = vmatpush.bf16.msra.mxu0 %v460
    %611 = vmatpush.bf16.msra.mxu0 %v459
    %612 = vmatpush.bf16.msra.mxu0 %v458
    %613 = vmatpush.bf16.msra.mxu0 %v457
    %614 = vmatpush.bf16.msra.mxu0 %v456
    %615 = vmatpush.bf16.msra.mxu0 %v455
    %616 = vmatmul.bf16.gmra.mxu0 %v40
    %v617 = vpop.f32.mrf.mxu0
    %v618 = vadd.f32 %v605, %v617
    %v619 = vpop.f32.mrf.mxu0
    %620 = vdwg.mxu0
    %621 = vmatpush.bf16.msra.mxu0 %v470
    %622 = vmatpush.bf16.msra.mxu0 %v469
    %623 = vmatpush.bf16.msra.mxu0 %v468
    %624 = vmatpush.bf16.msra.mxu0 %v467
    %625 = vmatpush.bf16.msra.mxu0 %v466
    %626 = vmatpush.bf16.msra.mxu0 %v465
    %627 = vmatpush.bf16.msra.mxu0 %v464
    %628 = vmatpush.bf16.msra.mxu0 %v463
    %629 = vmatmul.bf16.gmra.mxu0 %v41
    %v630 = vpop.f32.mrf.mxu0
    %v631 = vadd.f32 %v618, %v630
    %v632 = vpop.f32.mrf.mxu0
    %633 = vdwg.mxu0
    %634 = vmatpush.bf16.msra.mxu0 %v478
    %635 = vmatpush.bf16.msra.mxu0 %v477
    %636 = vmatpush.bf16.msra.mxu0 %v476
    %637 = vmatpush.bf16.msra.mxu0 %v475
    %638 = vmatpush.bf16.msra.mxu0 %v474
    %639 = vmatpush.bf16.msra.mxu0 %v473
    %640 = vmatpush.bf16.msra.mxu0 %v472
    %641 = vmatpush.bf16.msra.mxu0 %v471
    %642 = vmatmul.bf16.gmra.mxu0 %v42
    %v643 = vpop.f32.mrf.mxu0
    %v644 = vadd.f32 %v631, %v643
    %v645 = vpop.f32.mrf.mxu0
    %646 = vdwg.mxu0
    %647 = vmatpush.bf16.msra.mxu0 0
    %648 = vmatpush.bf16.msra.mxu0 %v554
    %649 = vmatpush.bf16.msra.mxu0 %v484
    %650 = vmatpush.bf16.msra.mxu0 %v483
    %651 = vmatpush.bf16.msra.mxu0 %v482
    %652 = vmatpush.bf16.msra.mxu0 %v481
    %653 = vmatpush.bf16.msra.mxu0 %v480
    %654 = vmatpush.bf16.msra.mxu0 %v479
    %655 = vmatmul.bf16.gmra.mxu0 %v550
    %v656 = vpop.f32.mrf.mxu0
    %v657 = vadd.f32 %v644, %v656
    %v658 = vpop.f32.mrf.mxu0
    %659 = vdwg.mxu0
    %v660 = vmax.f32 %v657, 0.0
    %v661 = vld [vmem:[%s3] sm:$0xff]
    %v662 = vld [vmem:[%s3 + $0x8] sm:$0xff]
    %v663 = vld [vmem:[%s3 + $0x10] sm:$0xff]
    %v664 = vld [vmem:[%s3 + $0x18] sm:$0xff]
    %v665 = vld [vmem:[%s4] sm:$0x1]
    %v667 = vperm.slane %v665, 0
    %vm669 = vcmask 261120
    %v671 = vsel %vm669, %v660, 0
    %673 = vmatpush.msra.mxu0 0.0
    %674 = vmatpush.msra.mxu0 0.0
    %675 = vmatpush.msra.mxu0 0.0
    %676 = vmatpush.msra.mxu0 0.0
    %677 = vmatpush.msra.mxu0 0.0
    %678 = vmatpush.msra.mxu0 0.0
    %679 = vmatpush.msra.mxu0 0.0
    %680 = vmatpush.msra.mxu0 0.0
    %681 = vmatpush.msra.mxu0 0.0
    %682 = vmatpush.msra.mxu0 0.0
    %683 = vmatpush.msra.mxu0 0.0
    %684 = vmatpush.msra.mxu0 0.0
    %685 = vmatpush.msra.mxu0 %v664
    %686 = vmatpush.msra.mxu0 %v663
    %687 = vmatpush.msra.mxu0 %v662
    %688 = vmatpush.msra.mxu0 %v661
    %689 = vmatmul.f32.gmra.mxu0 %v671
    %v690 = vpop.f32.mrf.mxu0
    %v691 = vadd.f32 %v667, %v690
    %692 = vdwg.mxu0
    %v693 = vmax.f32 %v691, 0.0
    %v694 = vld [vmem:[%s5] sm:$0xff]
    %v695 = vld [vmem:[%s5 + $0x8] sm:$0xff]
    %v696 = vld [vmem:[%s5 + $0x10] sm:$0xff]
    %v697 = vld [vmem:[%s5 + $0x18] sm:$0xff]
    %v698 = vld [vmem:[%s5 + $0x20] sm:$0xff]
    %v699 = vld [vmem:[%s5 + $0x28] sm:$0xff]
    %v700 = vld [vmem:[%s5 + $0x30] sm:$0xff]
    %v701 = vld [vmem:[%s5 + $0x38] sm:$0xff]
    %v702 = vld [vmem:[%s6] sm:$0x1]
    %v704 = vperm.slane %v702, 0
    %vm706 = vcmask 523264
    %v708 = vsel %vm706, %v693, 0
    %710 = vmatpush.msra.mxu0 0.0
    %711 = vmatpush.msra.mxu0 0.0
    %712 = vmatpush.msra.mxu0 0.0
    %713 = vmatpush.msra.mxu0 0.0
    %714 = vmatpush.msra.mxu0 0.0
    %715 = vmatpush.msra.mxu0 0.0
    %716 = vmatpush.msra.mxu0 0.0
    %717 = vmatpush.msra.mxu0 0.0
    %718 = vmatpush.msra.mxu0 %v701
    %719 = vmatpush.msra.mxu0 %v700
    %720 = vmatpush.msra.mxu0 %v699
    %721 = vmatpush.msra.mxu0 %v698
    %722 = vmatpush.msra.mxu0 %v697
    %723 = vmatpush.msra.mxu0 %v696
    %724 = vmatpush.msra.mxu0 %v695
    %725 = vmatpush.msra.mxu0 %v694
    %726 = vmatmul.f32.gmra.mxu0 %v708
    %v727 = vpop.f32.mrf.mxu0
    %v728 = vadd.f32 %v704, %v727
    %729 = vdwg.mxu0
    %v730 = vpack.c.bf16 %v728, %v728
    %731 = vst [vmem:[#allocation2] sm:$0xf] %v730
    // Predicated region
    $region30: #{tpu_custom_call.1} parent=1 // pred_check
      _
    $region31: #{tpu_custom_call.1} parent=1 // pred_check_branch
      %733 = sbr.rel (0) target = $region33
    $region32: #{tpu_custom_call.1} parent=1 // pred_region
      %735 = vsyncadd [#allocation3], 0
      %s737 = sshll.u32 [#allocation2], 4
      %s738 = int_to_ptr.vmem [resolvable:$true] %s737
      %s739 = sshll.u32 %s7, 4
      %s740 = int_to_ptr.hbm [resolvable:$true] %s739
      %742 = dma.vmem_to_hbm [thread:$0]  %s738, 64, %s740, [#allocation3]
    $region33: #{tpu_custom_call.1} parent=1 // pred_fallthru
      _
    // Predicated region
    $region34: #{tpu_custom_call.1} parent=1 // pred_check
      _
    $region35: #{tpu_custom_call.1} parent=1 // pred_check_branch
      %744 = sbr.rel (0) target = $region37
    $region36: #{tpu_custom_call.1} parent=1 // pred_region
      %746 = dma.done [#allocation3], 64
    $region37: #{tpu_custom_call.1} parent=1 // pred_fallthru
      _
    %747 = vsyncpa [#allocation3], 1

</llo_original>
